<compile_context>
chip_gen: v6e
topology: v6e:2x2x1
jax: 0.10.0
libtpu: 0.0.40
codegen_flags: <defaults>
</compile_context>

<pallas_src>
import functools

import jax
import jax.numpy as jnp
from jax.experimental import pallas as pl
from jax.experimental.pallas import tpu as pltpu


def _round_up(x: int, m: int) -> int:
    return ((x + m - 1) // m) * m


def _fused_mlp_kernel(*refs, n_layers: int, compute_dtype):
    """refs = (x_ref, w0, b0, w1, b1, ..., w_{n-1}, b_{n-1}, o_ref).

    w_j is pre-transposed to (in_j, out_j) in `compute_dtype` (bf16 by default);
    b_j is (1, out_j) f32.  Matmuls accumulate in f32 on the MXU; ReLU after
    every layer except the last (nn.Identity output activation); hidden
    activations are cast back to `compute_dtype` so every matmul is bf16xbf16.
    """
    x_ref = refs[0]
    o_ref = refs[-1]
    p = refs[1:-1]

    h = x_ref[...]
    for j in range(n_layers):
        w = p[2 * j][...]          # (in_j, out_j) -- feeds the MXU directly
        b = p[2 * j + 1][...]      # (1, out_j) f32 -- broadcast bias add
        y = jnp.dot(h, w, preferred_element_type=jnp.float32) + b
        if j < n_layers - 1:
            h = jnp.maximum(y, 0.0).astype(compute_dtype)
        else:
            h = y                  # final layer stays f32
    o_ref[...] = h.astype(o_ref.dtype)


def mlp_q_function(obs, params, *, block_batch: int = 4096,
                   no_grid_max: int = 1024, use_bf16: bool = True):
    """Fused forward pass of MLPQFunction.q (one pallas_call for the whole MLP).

    params: list of (W, b) with W stored pre-transposed as (in_features, out_features).
    Returns f32 Q-values of shape (batch, act_dim).
    """
    n_layers = len(params)
    batch, obs_dim = obs.shape
    act_dim = params[-1][0].shape[1]

    compute_dtype = jnp.bfloat16 if use_bf16 else jnp.float32
    obs_c = obs if obs.dtype == compute_dtype else obs.astype(compute_dtype)

    flat = []
    for w, b in params:
        flat.append(w if w.dtype == compute_dtype else w.astype(compute_dtype))
        flat.append(b.reshape(1, -1).astype(jnp.float32))

    kernel = functools.partial(_fused_mlp_kernel, n_layers=n_layers,
                               compute_dtype=compute_dtype)
    out_shape = jax.ShapeDtypeStruct((batch, act_dim), jnp.float32)

    if batch <= no_grid_max:
        # Small batch: no grid; every operand is a single whole-array VMEM block
        # (cheapest lowering, no pipeline prologue/epilogue).
        vmem = pl.BlockSpec(memory_space=pltpu.MemorySpace.VMEM)
        return pl.pallas_call(
            kernel,
            out_shape=out_shape,
            in_specs=[vmem] * (1 + 2 * n_layers),
            out_specs=vmem,
        )(obs_c, *flat)

    # ---- Large batch: tile only the batch axis (no padding, masked tail). ----
    # At least 2 blocks so v7x's two TensorCores can split a "parallel" axis;
    # otherwise use the biggest tile possible (best for single-TC v5e/v6e).
    bt = min(block_batch, _round_up(pl.cdiv(batch, 2), 8))
    # Cap so the widest live f32 activation stays <= ~8 MiB (safe on v7x's
    # 64 MiB VMEM / 32 MiB default scoped limit; v5e/v6e have more headroom).
    widest = max([obs_dim, act_dim] + [w.shape[1] for w, _ in params])
    vmem_cap_rows = max(8, ((8 << 20) // (4 * widest)) // 8 * 8)
    bt = max(8, min(_round_up(bt, 8), vmem_cap_rows))
    n_blocks = pl.cdiv(batch, bt)   # ragged last block: reads are padded, writes masked

    in_specs = [pl.BlockSpec((bt, obs_dim), lambda i: (i, 0))]
    for arr in flat:
        # Weights/biases: same (whole-array) block every step -> VMEM resident.
        in_specs.append(pl.BlockSpec(arr.shape, lambda i: (0, 0)))

    return pl.pallas_call(
        kernel,
        out_shape=out_shape,
        grid=(n_blocks,),
        in_specs=in_specs,
        out_specs=pl.BlockSpec((bt, act_dim), lambda i: (i, 0)),
        compiler_params=pltpu.CompilerParams(
            dimension_semantics=("parallel",)),
    )(obs_c, *flat)


def init_mlp_params(key, sizes):
    """PyTorch nn.Linear-style init U(-1/sqrt(fan_in), 1/sqrt(fan_in)), weights
    stored pre-transposed as (in_features, out_features)."""
    params = []
    for j in range(len(sizes) - 1):
        fan_in, fan_out = sizes[j], sizes[j + 1]
        key, kw, kb = jax.random.split(key, 3)
        bound = 1.0 / (fan_in ** 0.5)
        w = jax.random.uniform(kw, (fan_in, fan_out), jnp.float32, -bound, bound)
        b = jax.random.uniform(kb, (fan_out,), jnp.float32, -bound, bound)
        params.append((w, b))
    return params


def reference_mlp_q_function(obs, params, *, use_bf16: bool = True):
    """Pure-JAX reference mirroring the kernel's dtype handling."""
    compute_dtype = jnp.bfloat16 if use_bf16 else jnp.float32
    x = obs.astype(compute_dtype)
    n = len(params)
    for j, (w, b) in enumerate(params):
        y = jnp.dot(x, w.astype(compute_dtype),
                    preferred_element_type=jnp.float32) + b.astype(jnp.float32)
        if j < n - 1:
            x = jnp.maximum(y, 0.0).astype(compute_dtype)
        else:
            x = y
    return x


if __name__ == "__main__":
    # MLPQFunction(obs_dim=16, act_dim=4, hidden_sizes=(32, 32))
    obs_dim, act_dim = 16, 4
    hidden_sizes = (32, 32)

    key = jax.random.PRNGKey(0)
    sizes = [obs_dim] + list(hidden_sizes) + [act_dim]
    key, kp = jax.random.split(key)
    params = init_mlp_params(kp, sizes)

    # Small-batch fused path (no grid).
    key, kobs = jax.random.split(key)
    obs = jax.random.normal(kobs, (2, obs_dim), jnp.float32)
    q = jax.block_until_ready(mlp_q_function(obs, params))
    q_ref = reference_mlp_q_function(obs, params)
    assert q.shape == (2, act_dim)
    assert jnp.allclose(q, q_ref, atol=1e-3, rtol=1e-3)

    # Batch-tiled path with a ragged tail (1000 rows, tile 256 -> masked writes).
    key, kbig = jax.random.split(key)
    obs_big = jax.random.normal(kbig, (1000, obs_dim), jnp.float32)
    q_big = jax.block_until_ready(
        mlp_q_function(obs_big, params, block_batch=256, no_grid_max=0))
    q_big_ref = reference_mlp_q_function(obs_big, params)
    assert q_big.shape == (1000, act_dim)
    assert jnp.allclose(q_big, q_big_ref, atol=1e-3, rtol=1e-3)

    print("KERNEL_OK")
</pallas_src>

<mosaic_0001>
module attributes {stable_mosaic.version = 11 : i64} {
  func.func @_fused_mlp_kernel(%arg0: memref<2x16xbf16, #tpu.memory_space<vmem>>, %arg1: memref<16x32xbf16, #tpu.memory_space<vmem>>, %arg2: memref<1x32xf32, #tpu.memory_space<vmem>>, %arg3: memref<32x32xbf16, #tpu.memory_space<vmem>>, %arg4: memref<1x32xf32, #tpu.memory_space<vmem>>, %arg5: memref<32x4xbf16, #tpu.memory_space<vmem>>, %arg6: memref<1x4xf32, #tpu.memory_space<vmem>>, %arg7: memref<2x4xf32, #tpu.memory_space<vmem>>) attributes {dimension_semantics = [], scalar_prefetch = 0 : i64, scratch_operands = 0 : i64, tpu.core_type = #tpu.core_type<tc>} {
    %c0 = arith.constant 0 : index
    %c0_0 = arith.constant 0 : index
    %0 = vector.load %arg0[%c0, %c0_0] : memref<2x16xbf16, #tpu.memory_space<vmem>>, vector<2x16xbf16>
    %c0_1 = arith.constant 0 : index
    %c0_2 = arith.constant 0 : index
    %1 = vector.load %arg1[%c0_1, %c0_2] : memref<16x32xbf16, #tpu.memory_space<vmem>>, vector<16x32xbf16>
    %c0_3 = arith.constant 0 : index
    %c0_4 = arith.constant 0 : index
    %2 = vector.load %arg2[%c0_3, %c0_4] : memref<1x32xf32, #tpu.memory_space<vmem>>, vector<1x32xf32>
    %cst = arith.constant dense<0.000000e+00> : vector<2x32xf32>
    %3 = tpu.matmul %0, %1, %cst {dimension_numbers = #tpu.dot_dimension_numbers<[1], [0], [0], [1], [0, 0, 1, 1], [], []>} : vector<2x16xbf16>, vector<16x32xbf16>, vector<2x32xf32> -> vector<2x32xf32>
    %4 = vector.broadcast %2 : vector<1x32xf32> to vector<2x32xf32>
    %5 = arith.addf %3, %4 : vector<2x32xf32>
    %cst_5 = arith.constant 0.000000e+00 : f32
    %6 = vector.broadcast %cst_5 : f32 to vector<2x32xf32>
    %7 = arith.maximumf %5, %6 : vector<2x32xf32>
    %8 = arith.truncf %7 : vector<2x32xf32> to vector<2x32xbf16>
    %c0_6 = arith.constant 0 : index
    %c0_7 = arith.constant 0 : index
    %9 = vector.load %arg3[%c0_6, %c0_7] : memref<32x32xbf16, #tpu.memory_space<vmem>>, vector<32x32xbf16>
    %c0_8 = arith.constant 0 : index
    %c0_9 = arith.constant 0 : index
    %10 = vector.load %arg4[%c0_8, %c0_9] : memref<1x32xf32, #tpu.memory_space<vmem>>, vector<1x32xf32>
    %cst_10 = arith.constant dense<0.000000e+00> : vector<2x32xf32>
    %11 = tpu.matmul %8, %9, %cst_10 {dimension_numbers = #tpu.dot_dimension_numbers<[1], [0], [0], [1], [0, 0, 1, 1], [], []>} : vector<2x32xbf16>, vector<32x32xbf16>, vector<2x32xf32> -> vector<2x32xf32>
    %12 = vector.broadcast %10 : vector<1x32xf32> to vector<2x32xf32>
    %13 = arith.addf %11, %12 : vector<2x32xf32>
    %cst_11 = arith.constant 0.000000e+00 : f32
    %14 = vector.broadcast %cst_11 : f32 to vector<2x32xf32>
    %15 = arith.maximumf %13, %14 : vector<2x32xf32>
    %16 = arith.truncf %15 : vector<2x32xf32> to vector<2x32xbf16>
    %c0_12 = arith.constant 0 : index
    %c0_13 = arith.constant 0 : index
    %17 = vector.load %arg5[%c0_12, %c0_13] : memref<32x4xbf16, #tpu.memory_space<vmem>>, vector<32x4xbf16>
    %c0_14 = arith.constant 0 : index
    %c0_15 = arith.constant 0 : index
    %18 = vector.load %arg6[%c0_14, %c0_15] : memref<1x4xf32, #tpu.memory_space<vmem>>, vector<1x4xf32>
    %cst_16 = arith.constant dense<0.000000e+00> : vector<2x4xf32>
    %19 = tpu.matmul %16, %17, %cst_16 {dimension_numbers = #tpu.dot_dimension_numbers<[1], [0], [0], [1], [0, 0, 1, 1], [], []>} : vector<2x32xbf16>, vector<32x4xbf16>, vector<2x4xf32> -> vector<2x4xf32>
    %20 = vector.broadcast %18 : vector<1x4xf32> to vector<2x4xf32>
    %21 = arith.addf %19, %20 : vector<2x4xf32>
    %c0_17 = arith.constant 0 : index
    %c0_18 = arith.constant 0 : index
    %22 = vector.load %arg7[%c0_17, %c0_18] : memref<2x4xf32, #tpu.memory_space<vmem>>, vector<2x4xf32>
    tpu.vector_store %arg7[%c0_17, %c0_18], %21 {strides = array<i32>} : memref<2x4xf32, #tpu.memory_space<vmem>>, vector<2x4xf32>,
    return
  }
}

</mosaic_0001>

<llo_original>
// kernel: tpu_custom_call.1
$region0: #{tpu_custom_call.1}
  #allocation0 [shape = 'u32[]', space=smem, size = 0x4, offset = 0x4, fixed_abs, tag = 'smem constant byte address 0x4 - core index']
  #allocation1 [shape = 'u32[144,128]{1,0:T(1,128)}', space=vmem, size = 0x12000, scoped, tag = 'internal scratch']
  %s0 = inlined_call_operand.vmem [shape: bf16[2,16], index: 0, kind: input, shape index: {}]
  %s1 = inlined_call_operand.hbm [shape: bf16[16,32], index: 1, kind: input, shape index: {}]
  %s2 = inlined_call_operand.vmem [shape: f32[1,32], index: 2, kind: input, shape index: {}]
  %s3 = inlined_call_operand.vmem [shape: bf16[32,32], index: 3, kind: input, shape index: {}]
  %s4 = inlined_call_operand.vmem [shape: f32[1,32], index: 4, kind: input, shape index: {}]
  %s5 = inlined_call_operand.vmem [shape: bf16[32,4], index: 5, kind: input, shape index: {}]
  %s6 = inlined_call_operand.vmem [shape: f32[1,4], index: 6, kind: input, shape index: {}]
  %s7 = inlined_call_operand.hbm [shape: f32[2,4], index: 7, kind: output, shape index: {}]
  %s8 = sld [smem:[#allocation0]]
  $region42: #{tpu_custom_call.1} parent=0
    _
  %s10 = ssub.s32 1, %s8
  %s11 = scalar_select 0, %s10, %s8
  $region1: #{tpu_custom_call.1} parent=0
    #allocation2 [shape = 'u8[4096]{0}', space=vmem, size = 0x1000, scoped, tag = 'input window, operand 1, single buffered']
    #allocation3 [shape = 's32[1]{0}', space=sflag, size = 0x4, scoped, tag = 'scoped memory for tpu_custom_call.1']
    #allocation4 [shape = 's32[1]{0}', space=sflag, size = 0x4, scoped, tag = 'scoped memory for tpu_custom_call.1']
    #allocation5 [shape = 'u8[1024]{0}', space=vmem, size = 0x400, scoped, tag = 'output window, operand 0, single buffered']
    %12 = vsyncpa [#allocation3], 0
    %13 = vsyncpa [#allocation4], 0
    // Predicated region
    $region2: #{tpu_custom_call.1} parent=1 // pred_check
      _
    $region3: #{tpu_custom_call.1} parent=1 // pred_check_branch
      %15 = sbr.rel (0) target = $region5
    $region4: #{tpu_custom_call.1} parent=1 // pred_region
      _
    $region5: #{tpu_custom_call.1} parent=1 // pred_fallthru
      _
    // Predicated region
    $region6: #{tpu_custom_call.1} parent=1 // pred_check
      _
    $region7: #{tpu_custom_call.1} parent=1 // pred_check_branch
      %17 = sbr.rel (0) target = $region9
    $region8: #{tpu_custom_call.1} parent=1 // pred_region
      %s19 = ssub.s32 128, 128
      %20 = vsyncadd [#allocation3], %s19
      %s21 = sshll.u32 [#allocation2], 4
      %s22 = int_to_ptr.vmem [resolvable:$true] %s21
      %27 = dma.hbm_to_vmem [thread:$0]  %s1, 128, %s22, [#allocation3], 64, 64, 4
    $region9: #{tpu_custom_call.1} parent=1 // pred_fallthru
      _
    // Predicated region
    $region10: #{tpu_custom_call.1} parent=1 // pred_check
      _
    $region11: #{tpu_custom_call.1} parent=1 // pred_check_branch
      %29 = sbr.rel (0) target = $region13
    $region12: #{tpu_custom_call.1} parent=1 // pred_region
      _
    $region13: #{tpu_custom_call.1} parent=1 // pred_fallthru
      _
    // Predicated region
    $region14: #{tpu_custom_call.1} parent=1 // pred_check
      _
    $region15: #{tpu_custom_call.1} parent=1 // pred_check_branch
      %31 = sbr.rel (0) target = $region17
    $region16: #{tpu_custom_call.1} parent=1 // pred_region
      _
    $region17: #{tpu_custom_call.1} parent=1 // pred_fallthru
      _
    // Predicated region
    $region18: #{tpu_custom_call.1} parent=1 // pred_check
      _
    $region19: #{tpu_custom_call.1} parent=1 // pred_check_branch
      %33 = sbr.rel (0) target = $region21
    $region20: #{tpu_custom_call.1} parent=1 // pred_region
      _
    $region21: #{tpu_custom_call.1} parent=1 // pred_fallthru
      _
    // Predicated region
    $region22: #{tpu_custom_call.1} parent=1 // pred_check
      _
    $region23: #{tpu_custom_call.1} parent=1 // pred_check_branch
      %35 = sbr.rel (0) target = $region25
    $region24: #{tpu_custom_call.1} parent=1 // pred_region
      _
    $region25: #{tpu_custom_call.1} parent=1 // pred_fallthru
      _
    // Predicated region
    $region26: #{tpu_custom_call.1} parent=1 // pred_check
      _
    $region27: #{tpu_custom_call.1} parent=1 // pred_check_branch
      %37 = sbr.rel (0) target = $region29
    $region28: #{tpu_custom_call.1} parent=1 // pred_region
      _
    $region29: #{tpu_custom_call.1} parent=1 // pred_fallthru
      _
    // Predicated region
    $region30: #{tpu_custom_call.1} parent=1 // pred_check
      _
    $region31: #{tpu_custom_call.1} parent=1 // pred_check_branch
      %39 = sbr.rel (0) target = $region33
    $region32: #{tpu_custom_call.1} parent=1 // pred_region
      %40 = dma.done [#allocation3], 128
    $region33: #{tpu_custom_call.1} parent=1 // pred_fallthru
      _
    %v42 = vld [vmem:[%s0] sm:$0x1]
    %v43 = vld [vmem:[#allocation2] sm:$0xf]
    %v44 = vld [vmem:[#allocation2 + $0x4] sm:$0xf]
    %v45 = vld [vmem:[%s2] sm:$0x1]
    %v47 = vlaneseq
    %v48 = vshrl.u32 %v47, 7
    %v49 = vsub.s32 0, %v48
    %v50 = vrot.slane %v45, %v49
    %v54 = vunpack.c.l.b16 %v43
    %v55 = vunpack.c.l.b16 %v44
    %v56 = vpack.c.b16 %v55, %v54
    %vm58 = vcmask 130048
    %v60 = vsel %vm58, %v42, 0
    %62 = vmatprep.subr.bf16.mxu0 0
    %63 = vmatpush1.bf16.msra.mxu0 0
    %64 = vmatprep.subr.bf16.mxu0 0
    %65 = vmatpush1.bf16.msra.mxu0 0
    %66 = vmatprep.subr.bf16.mxu0 0
    %67 = vmatpush1.bf16.msra.mxu0 0
    %68 = vmatprep.subr.bf16.mxu0 0
    %69 = vmatpush1.bf16.msra.mxu0 0
    %70 = vmatprep.subr.bf16.mxu0 0
    %71 = vmatpush1.bf16.msra.mxu0 0
    %72 = vmatprep.subr.bf16.mxu0 0
    %73 = vmatpush1.bf16.msra.mxu0 0
    %74 = vmatprep.subr.bf16.mxu0 0
    %75 = vmatpush1.bf16.msra.mxu0 0
    %76 = vmatprep.subr.bf16.mxu0 0
    %77 = vmatpush1.bf16.msra.mxu0 %v56
    %78 = vmatprep.subr.bf16.mxu0 0
    %79 = vmatpush2.bf16.msra.mxu0 0
    %80 = vmatprep.subr.bf16.mxu0 0
    %81 = vmatpush2.bf16.msra.mxu0 0
    %82 = vmatprep.subr.bf16.mxu0 0
    %83 = vmatpush2.bf16.msra.mxu0 0
    %84 = vmatprep.subr.bf16.mxu0 0
    %85 = vmatpush2.bf16.msra.mxu0 0
    %86 = vmatprep.subr.bf16.mxu0 0
    %87 = vmatpush2.bf16.msra.mxu0 0
    %88 = vmatprep.subr.bf16.mxu0 0
    %89 = vmatpush2.bf16.msra.mxu0 0
    %90 = vmatprep.subr.bf16.mxu0 0
    %91 = vmatpush2.bf16.msra.mxu0 0
    %92 = vmatprep.subr.bf16.mxu0 0
    %93 = vmatpush2.bf16.msra.mxu0 0
    %94 = vmatprep.mubr.bf16.mxu0 0
    %95 = vmatmul.mubr.bf16.gmra.mxu0 %v60
    %v96 = vpop.f32.mrf.mxu0
    %v97 = vadd.f32 %v50, %v96
    %v98 = vpop.f32.mrf.mxu0
    %v99 = vpop.f32.mrf.mxu0
    %v100 = vpop.f32.mrf.mxu0
    %101 = vdwg.mxu0
    %v102 = vmax.f32 %v97, 0.0
    %v103 = vpack.c.bf16 %v102, %v102
    %v104 = vld [vmem:[%s3] sm:$0xf]
    %v105 = vld [vmem:[%s3 + $0x4] sm:$0xf]
    %v106 = vld [vmem:[%s3 + $0x8] sm:$0xf]
    %v107 = vld [vmem:[%s3 + $0xc] sm:$0xf]
    %v108 = vld [vmem:[%s4] sm:$0x1]
    %v110 = vlaneseq
    %v111 = vshrl.u32 %v110, 7
    %v112 = vsub.s32 0, %v111
    %v113 = vrot.slane %v108, %v112
    %v119 = vunpack.c.l.b16 %v104
    %v120 = vunpack.c.l.b16 %v105
    %v121 = vunpack.c.l.b16 %v106
    %v122 = vunpack.c.l.b16 %v107
    %v123 = vpack.c.b16 %v120, %v119
    %v124 = vpack.c.b16 %v122, %v121
    %vm127 = vcmask 261120
    %v129 = vsel %vm127, %v103, 0
    %131 = vmatprep.subr.bf16.mxu0 0
    %132 = vmatpush1.bf16.msra.mxu0 0
    %133 = vmatprep.subr.bf16.mxu0 0
    %134 = vmatpush1.bf16.msra.mxu0 0
    %135 = vmatprep.subr.bf16.mxu0 0
    %136 = vmatpush1.bf16.msra.mxu0 0
    %137 = vmatprep.subr.bf16.mxu0 0
    %138 = vmatpush1.bf16.msra.mxu0 0
    %139 = vmatprep.subr.bf16.mxu0 0
    %140 = vmatpush1.bf16.msra.mxu0 0
    %141 = vmatprep.subr.bf16.mxu0 0
    %142 = vmatpush1.bf16.msra.mxu0 0
    %143 = vmatprep.subr.bf16.mxu0 0
    %144 = vmatpush1.bf16.msra.mxu0 %v124
    %145 = vmatprep.subr.bf16.mxu0 0
    %146 = vmatpush1.bf16.msra.mxu0 %v123
    %147 = vmatprep.subr.bf16.mxu0 0
    %148 = vmatpush2.bf16.msra.mxu0 0
    %149 = vmatprep.subr.bf16.mxu0 0
    %150 = vmatpush2.bf16.msra.mxu0 0
    %151 = vmatprep.subr.bf16.mxu0 0
    %152 = vmatpush2.bf16.msra.mxu0 0
    %153 = vmatprep.subr.bf16.mxu0 0
    %154 = vmatpush2.bf16.msra.mxu0 0
    %155 = vmatprep.subr.bf16.mxu0 0
    %156 = vmatpush2.bf16.msra.mxu0 0
    %157 = vmatprep.subr.bf16.mxu0 0
    %158 = vmatpush2.bf16.msra.mxu0 0
    %159 = vmatprep.subr.bf16.mxu0 0
    %160 = vmatpush2.bf16.msra.mxu0 0
    %161 = vmatprep.subr.bf16.mxu0 0
    %162 = vmatpush2.bf16.msra.mxu0 0
    %163 = vmatprep.mubr.bf16.mxu0 0
    %164 = vmatmul.mubr.bf16.gmra.mxu0 %v129
    %v165 = vpop.f32.mrf.mxu0
    %v166 = vadd.f32 %v113, %v165
    %v167 = vpop.f32.mrf.mxu0
    %v168 = vpop.f32.mrf.mxu0
    %v169 = vpop.f32.mrf.mxu0
    %170 = vdwg.mxu0
    %v171 = vmax.f32 %v166, 0.0
    %v172 = vpack.c.bf16 %v171, %v171
    %v173 = vld [vmem:[%s5] sm:$0xf]
    %v174 = vld [vmem:[%s5 + $0x4] sm:$0xf]
    %v175 = vld [vmem:[%s5 + $0x8] sm:$0xf]
    %v176 = vld [vmem:[%s5 + $0xc] sm:$0xf]
    %v177 = vld [vmem:[%s6] sm:$0x1]
    %v179 = vlaneseq
    %v180 = vshrl.u32 %v179, 7
    %v181 = vsub.s32 0, %v180
    %v182 = vrot.slane %v177, %v181
    %v188 = vunpack.c.l.b16 %v173
    %v189 = vunpack.c.l.b16 %v174
    %v190 = vunpack.c.l.b16 %v175
    %v191 = vunpack.c.l.b16 %v176
    %v192 = vpack.c.b16 %v189, %v188
    %v193 = vpack.c.b16 %v191, %v190
    %v197 = vsel %vm127, %v172, 0
    %199 = vmatprep.subr.bf16.mxu0 0
    %200 = vmatpush1.bf16.msra.mxu0 0
    %201 = vmatprep.subr.bf16.mxu0 0
    %202 = vmatpush1.bf16.msra.mxu0 0
    %203 = vmatprep.subr.bf16.mxu0 0
    %204 = vmatpush1.bf16.msra.mxu0 0
    %205 = vmatprep.subr.bf16.mxu0 0
    %206 = vmatpush1.bf16.msra.mxu0 0
    %207 = vmatprep.subr.bf16.mxu0 0
    %208 = vmatpush1.bf16.msra.mxu0 0
    %209 = vmatprep.subr.bf16.mxu0 0
    %210 = vmatpush1.bf16.msra.mxu0 0
    %211 = vmatprep.subr.bf16.mxu0 0
    %212 = vmatpush1.bf16.msra.mxu0 %v193
    %213 = vmatprep.subr.bf16.mxu0 0
    %214 = vmatpush1.bf16.msra.mxu0 %v192
    %215 = vmatprep.subr.bf16.mxu0 0
    %216 = vmatpush2.bf16.msra.mxu0 0
    %217 = vmatprep.subr.bf16.mxu0 0
    %218 = vmatpush2.bf16.msra.mxu0 0
    %219 = vmatprep.subr.bf16.mxu0 0
    %220 = vmatpush2.bf16.msra.mxu0 0
    %221 = vmatprep.subr.bf16.mxu0 0
    %222 = vmatpush2.bf16.msra.mxu0 0
    %223 = vmatprep.subr.bf16.mxu0 0
    %224 = vmatpush2.bf16.msra.mxu0 0
    %225 = vmatprep.subr.bf16.mxu0 0
    %226 = vmatpush2.bf16.msra.mxu0 0
    %227 = vmatprep.subr.bf16.mxu0 0
    %228 = vmatpush2.bf16.msra.mxu0 0
    %229 = vmatprep.subr.bf16.mxu0 0
    %230 = vmatpush2.bf16.msra.mxu0 0
    %231 = vmatprep.mubr.bf16.mxu0 0
    %232 = vmatmul.mubr.bf16.gmra.mxu0 %v197
    %v233 = vpop.f32.mrf.mxu0
    %v234 = vadd.f32 %v182, %v233
    %v235 = vpop.f32.mrf.mxu0
    %v236 = vpop.f32.mrf.mxu0
    %v237 = vpop.f32.mrf.mxu0
    %238 = vdwg.mxu0
    %vm239 = vcmask 25600
    %240 = vst.msk [vmem:[#allocation5] sm:$0x3] %vm239, %v234
    // Predicated region
    $region34: #{tpu_custom_call.1} parent=1 // pred_check
      _
    $region35: #{tpu_custom_call.1} parent=1 // pred_check_branch
      %242 = sbr.rel (0) target = $region37
    $region36: #{tpu_custom_call.1} parent=1 // pred_region
      %s244 = ssub.s32 32, 32
      %245 = vsyncadd [#allocation4], %s244
      %s247 = sshll.u32 [#allocation5], 4
      %s248 = int_to_ptr.vmem [resolvable:$true] %s247
      %250 = dma.vmem_to_hbm [thread:$0]  %s248, 32, %s7, [#allocation4]
    $region37: #{tpu_custom_call.1} parent=1 // pred_fallthru
      _
    // Predicated region
    $region38: #{tpu_custom_call.1} parent=1 // pred_check
      _
    $region39: #{tpu_custom_call.1} parent=1 // pred_check_branch
      %252 = sbr.rel (0) target = $region41
    $region40: #{tpu_custom_call.1} parent=1 // pred_region
      %253 = dma.done [#allocation4], 32
    $region41: #{tpu_custom_call.1} parent=1 // pred_fallthru
      _
    %254 = vsyncpa [#allocation3], 1
    %255 = vsyncpa [#allocation4], 1

</llo_original>
